<compile_context>
chip_gen: v5e
topology: v5e:2x2
jax: 0.10.0
libtpu: 0.0.40
codegen_flags: <defaults>
</compile_context>

<pallas_src>
import functools
import math

import jax
import jax.numpy as jnp
from jax.experimental import pallas as pl
from jax.experimental.pallas import tpu as pltpu

_LANE = 128


def _hloss_kernel(x_ref, o_ref, acc_ref, *, inv_temp, inv_total, hw, tile_s,
                  eps, need_mask):
    t = pl.program_id(1)

    @pl.when(t == 0)
    def _():
        acc_ref[...] = jnp.zeros_like(acc_ref)

    # (C, tile_s): softmax axis (C) on sublanes, spatial tile on lanes.
    x = x_ref[0].astype(jnp.float32) * jnp.float32(inv_temp)

    if need_mask:
        col = jax.lax.broadcasted_iota(jnp.int32, x.shape, 1)
        valid = hw - t * tile_s            # static ints -> traced scalar
        mask = col < valid
        x = jnp.where(mask, x, 0.0)        # keep padded lanes finite

    # numerically-stable softmax over the class (sublane) axis
    m = jnp.max(x, axis=0, keepdims=True)             # (1, tile_s)
    e = jnp.exp(x - m)                                # (C, tile_s)
    s = jnp.sum(e, axis=0, keepdims=True)             # (1, tile_s)
    p = e * pl.reciprocal(s, approx=False)            # EUP recip + VPU mul

    ent = -p * jnp.log(p + eps)                       # torch: log(softmax + 1e-6)
    if need_mask:
        ent = jnp.where(mask, ent, 0.0)

    # lane-shaped accumulator: pure VPU add per step, no per-step XLU reduce
    acc_ref[...] += ent

    @pl.when(t == pl.num_programs(1) - 1)
    def _():
        o_ref[...] = (jnp.sum(acc_ref[...]) *
                      jnp.float32(inv_total)).reshape(1, 1, 1)


def hloss(x, temp_factor=1.0, *, max_block_bytes=4 * 1024 * 1024):
    """Entropy of softmax(x / temp_factor, dim=1), averaged over all elements."""
    if x.ndim >= 3:
        n, c = int(x.shape[0]), int(x.shape[1])
        hw = int(math.prod(x.shape[2:]))
        x3 = x.reshape(n, c, hw)                       # free reshape (contiguous NCHW)
    elif x.ndim == 2:
        b, c = int(x.shape[0]), int(x.shape[1])
        # put the batch on the lane axis so small C stays lane-dense
        x3 = jnp.transpose(x, (1, 0)).reshape(1, c, b)
        n, hw = 1, b
    else:
        raise ValueError("expected input with ndim >= 2 (softmax over dim=1)")

    total = int(x.size)

    # spatial tile: multiple of 128 lanes, sized against a VMEM byte budget
    bytes_per_col = max(1, c * 4)
    max_cols = max(_LANE, (max_block_bytes // bytes_per_col) // _LANE * _LANE)
    if hw <= _LANE:
        tile_s = hw                                    # full extent, no padding needed
    else:
        tile_s = min(max_cols, (hw // _LANE) * _LANE)  # multiple of 128, <= hw
    num_tiles = pl.cdiv(hw, tile_s)
    need_mask = (hw % tile_s) != 0

    kernel = functools.partial(
        _hloss_kernel,
        inv_temp=1.0 / float(temp_factor),
        inv_total=1.0 / float(total),
        hw=hw,
        tile_s=tile_s,
        eps=1e-6,
        need_mask=need_mask,
    )

    cost = pl.CostEstimate(
        flops=8 * total,
        transcendentals=2 * total,                      # exp + log per element
        bytes_accessed=total * x.dtype.itemsize + n * 4,
    )

    partials = pl.pallas_call(
        kernel,
        out_shape=jax.ShapeDtypeStruct((n, 1, 1), jnp.float32),
        grid_spec=pltpu.PrefetchScalarGridSpec(
            num_scalar_prefetch=0,
            grid=(n, num_tiles),
            in_specs=[pl.BlockSpec((1, c, tile_s), lambda g, t: (g, 0, t))],
            out_specs=pl.BlockSpec((1, 1, 1), lambda g, t: (g, 0, 0)),
            scratch_shapes=[pltpu.VMEM((c, tile_s), jnp.float32)],
        ),
        compiler_params=pltpu.CompilerParams(
            dimension_semantics=("parallel", "arbitrary"),
            vmem_limit_bytes=32 * 1024 * 1024,
        ),
        cost_estimate=cost,
    )(x3)

    # sum of per-batch partial means (each already scaled by 1/total)
    return jnp.sum(partials)


def hloss_ref(x, temp_factor=1.0):
    # pure-JAX reference mirroring the PyTorch module
    xs = x.astype(jnp.float32) / temp_factor
    sm = jax.nn.softmax(xs, axis=1)
    ent = -sm * jnp.log(sm + 1e-6)
    return jnp.mean(ent)


if __name__ == "__main__":
    key = jax.random.PRNGKey(0)

    # Primary case: small NCHW logits, softmax over dim=1 (the channel axis).
    x = jax.random.normal(key, (2, 4, 16, 16), dtype=jnp.float32)
    out = jax.block_until_ready(hloss(x, temp_factor=1.0))
    ref = hloss_ref(x, temp_factor=1.0)
    assert jnp.allclose(out, ref, rtol=1e-5, atol=1e-6), (out, ref)

    # Ragged spatial extent (H*W = 240, not a multiple of 128) -> in-kernel masking.
    x2 = jax.random.normal(jax.random.PRNGKey(1), (2, 4, 12, 20), dtype=jnp.float32)
    out2 = jax.block_until_ready(hloss(x2, temp_factor=0.5))
    ref2 = hloss_ref(x2, temp_factor=0.5)
    assert jnp.allclose(out2, ref2, rtol=1e-5, atol=1e-6), (out2, ref2)

    # 2-D classifier logits (B, C): lane-dense transposed path.
    x3 = jax.random.normal(jax.random.PRNGKey(2), (8, 10), dtype=jnp.float32)
    out3 = jax.block_until_ready(hloss(x3, temp_factor=2.0))
    ref3 = hloss_ref(x3, temp_factor=2.0)
    assert jnp.allclose(out3, ref3, rtol=1e-5, atol=1e-6), (out3, ref3)

    print("KERNEL_OK")
</pallas_src>

<mosaic_0001>
module attributes {stable_mosaic.version = 11 : i64} {
  func.func @_hloss_kernel(%arg0: i32, %arg1: i32, %arg2: memref<1x4x256xf32, #tpu.memory_space<vmem>>, %arg3: memref<1x1x1xf32, #tpu.memory_space<vmem>>, %arg4: memref<4x256xf32, #tpu.memory_space<vmem>>) attributes {dimension_semantics = [#tpu.dimension_semantics<parallel>, #tpu.dimension_semantics<arbitrary>], iteration_bounds = array<i64: 2, 1>, scalar_prefetch = 0 : i64, scratch_operands = 1 : i64, tpu.core_type = #tpu.core_type<tc>, window_params = [{transform_indices = @transform_0, window_bounds = array<i64: 1, 4, 256>}, {transform_indices = @transform_1, window_bounds = array<i64: 1, 1, 1>}]} {
    %c0_i32 = arith.constant 0 : i32
    %0 = arith.cmpi eq, %arg1, %c0_i32 : i32
    %1 = arith.extui %0 : i1 to i32
    %c0_i32_0 = arith.constant 0 : i32
    %2 = arith.cmpi ne, %1, %c0_i32_0 : i32
    scf.if %2 {
      %cst_13 = arith.constant 0.000000e+00 : f32
      %29 = vector.broadcast %cst_13 : f32 to vector<4x256xf32>
      %c0_14 = arith.constant 0 : index
      %c0_15 = arith.constant 0 : index
      %30 = vector.load %arg4[%c0_14, %c0_15] : memref<4x256xf32, #tpu.memory_space<vmem>>, vector<4x256xf32>
      tpu.vector_store %arg4[%c0_14, %c0_15], %29 {strides = array<i32>} : memref<4x256xf32, #tpu.memory_space<vmem>>, vector<4x256xf32>,
    } else {
    }
    %c0 = arith.constant 0 : index
    %c0_1 = arith.constant 0 : index
    %c0_2 = arith.constant 0 : index
    %3 = vector.load %arg2[%c0, %c0_1, %c0_2] : memref<1x4x256xf32, #tpu.memory_space<vmem>>, vector<1x4x256xf32>
    %4 = vector.shape_cast %3 : vector<1x4x256xf32> to vector<4x256xf32>
    %cst = arith.constant 1.000000e+00 : f32
    %5 = vector.broadcast %cst : f32 to vector<4x256xf32>
    %6 = arith.mulf %4, %5 : vector<4x256xf32>
    %cst_3 = arith.constant dense<0xFF800000> : vector<256xf32>
    %7 = vector.multi_reduction <maximumf>, %6, %cst_3 [0] : vector<4x256xf32> to vector<256xf32>
    %8 = vector.shape_cast %7 : vector<256xf32> to vector<1x256xf32>
    %9 = vector.broadcast %8 : vector<1x256xf32> to vector<4x256xf32>
    %10 = arith.subf %6, %9 : vector<4x256xf32>
    %11 = math.exp %10 : vector<4x256xf32>
    %cst_4 = arith.constant dense<0.000000e+00> : vector<256xf32>
    %12 = vector.multi_reduction <add>, %11, %cst_4 [0] : vector<4x256xf32> to vector<256xf32>
    %13 = vector.shape_cast %12 : vector<256xf32> to vector<1x256xf32>
    %14 = tpu.reciprocal %13 : vector<1x256xf32> -> vector<1x256xf32>
    %15 = vector.broadcast %14 : vector<1x256xf32> to vector<4x256xf32>
    %16 = arith.mulf %11, %15 : vector<4x256xf32>
    %cst_5 = arith.constant 0.000000e+00 : f32
    %17 = vector.broadcast %cst_5 : f32 to vector<4x256xf32>
    %18 = arith.subf %17, %16 : vector<4x256xf32>
    %cst_6 = arith.constant 9.99999997E-7 : f32
    %19 = vector.broadcast %cst_6 : f32 to vector<4x256xf32>
    %20 = arith.addf %16, %19 : vector<4x256xf32>
    %21 = math.log %20 : vector<4x256xf32>
    %22 = arith.mulf %18, %21 : vector<4x256xf32>
    %c0_7 = arith.constant 0 : index
    %c0_8 = arith.constant 0 : index
    %23 = vector.load %arg4[%c0_7, %c0_8] : memref<4x256xf32, #tpu.memory_space<vmem>>, vector<4x256xf32>
    %24 = arith.addf %23, %22 : vector<4x256xf32>
    %c0_9 = arith.constant 0 : index
    %c0_10 = arith.constant 0 : index
    %25 = vector.load %arg4[%c0_9, %c0_10] : memref<4x256xf32, #tpu.memory_space<vmem>>, vector<4x256xf32>
    tpu.vector_store %arg4[%c0_9, %c0_10], %24 {strides = array<i32>} : memref<4x256xf32, #tpu.memory_space<vmem>>, vector<4x256xf32>,
    %c0_i32_11 = arith.constant 0 : i32
    %26 = arith.cmpi eq, %arg1, %c0_i32_11 : i32
    %27 = arith.extui %26 : i1 to i32
    %c0_i32_12 = arith.constant 0 : i32
    %28 = arith.cmpi ne, %27, %c0_i32_12 : i32
    scf.if %28 {
      %c0_13 = arith.constant 0 : index
      %c0_14 = arith.constant 0 : index
      %29 = vector.load %arg4[%c0_13, %c0_14] : memref<4x256xf32, #tpu.memory_space<vmem>>, vector<4x256xf32>
      %30 = vector.shape_cast %29 : vector<4x256xf32> to vector<1x4x256xf32>
      %cst_15 = arith.constant dense<0.000000e+00> : vector<1xf32>
      %31 = vector.multi_reduction <add>, %30, %cst_15 [1, 2] : vector<1x4x256xf32> to vector<1xf32>
      %32 = vector.shape_cast %31 : vector<1xf32> to vector<1x1x1xf32>
      %33 = vector.extract %32[0, 0, 0] : f32 from vector<1x1x1xf32>
      %cst_16 = arith.constant 4.8828125E-4 : f32
      %34 = arith.mulf %33, %cst_16 : f32
      %35 = vector.broadcast %34 : f32 to vector<1x1x1xf32>
      %c0_17 = arith.constant 0 : index
      %c0_18 = arith.constant 0 : index
      %c0_19 = arith.constant 0 : index
      %36 = vector.load %arg3[%c0_17, %c0_18, %c0_19] : memref<1x1x1xf32, #tpu.memory_space<vmem>>, vector<1x1x1xf32>
      tpu.vector_store %arg3[%c0_17, %c0_18, %c0_19], %35 {strides = array<i32>} : memref<1x1x1xf32, #tpu.memory_space<vmem>>, vector<1x1x1xf32>,
    } else {
    }
    return
  }
  func.func @transform_0(%arg0: i32, %arg1: i32) -> (i32, i32, i32) {
    %c0_i32 = arith.constant 0 : i32
    %c0_i32_0 = arith.constant 0 : i32
    return %arg0, %c0_i32, %arg1 : i32, i32, i32
  }
  func.func @transform_1(%arg0: i32, %arg1: i32) -> (i32, i32, i32) {
    %c0_i32 = arith.constant 0 : i32
    %c0_i32_0 = arith.constant 0 : i32
    %c0_i32_1 = arith.constant 0 : i32
    return %arg0, %c0_i32, %c0_i32_0 : i32, i32, i32
  }
}

</mosaic_0001>

<llo_original>
// kernel: tpu_custom_call.1
$region0: #{tpu_custom_call.1}
  #allocation0 [shape = 'u32[]', space=smem, size = 0x4, offset = 0x4, fixed_abs, tag = 'smem constant byte address 0x4 - core index']
  #allocation1 [shape = 'u32[72,128]{1,0:T(1,128)}', space=vmem, size = 0x9000, scoped, tag = 'internal scratch']
  #allocation2 [shape = 'f32[4,256]{1,0:T(4,128)}', space=vmem, size = 0x1000, scoped, tag = 'scratch operand']
  %s0 = inlined_call_operand.hbm [shape: f32[2,4,256], index: 0, kind: input, shape index: {}]
  %s1 = inlined_call_operand.vmem [shape: f32[2,1,1], index: 1, kind: output, shape index: {}]
  %s2 = sld [smem:[#allocation0]]
  $region49: #{tpu_custom_call.1} parent=0
    _
  %s4 = ssub.s32 1, %s2
  %s5 = scalar_select 0, %s4, %s2
  $region1: #{tpu_custom_call.1} parent=0
    #allocation3 [shape = 'u8[8192]{0}', space=vmem, size = 0x2000, scoped, tag = 'input window, operand 0']
    #allocation4 [shape = 's32[2]{0}', space=sflag, size = 0x8, scoped, tag = 'scoped memory for tpu_custom_call.1']
    %6 = vsyncpa [#allocation4], 0
    %s7 = scalar_lea.sflag [#allocation4], 1
    %8 = vsyncpa %s7, 0
    loop: start=0, step=1, limit=4
    $region2: #{tpu_custom_call.1} parent=1 // loop_pre_header
      _
    $region3: #{tpu_custom_call.1} parent=1 // loop_header
      %s10 = sphi 0, %s14
      %p11 = scmp.ge.s32.totalorder %s10, 4
      %s17 = sphi 0, %s29
      %s18 = sphi 0, %s25
      %s19 = sphi 0, %s17
      %s20 = sphi 0, %s18
      %s21 = sphi 0, %s19
      %s22 = sphi 0, %s20
      %s34 = sphi 0, %s36
      %s37 = sphi 0, %s34
      %s38 = sphi 0, %s37
      %s54 = sphi 0, %s38
      %s60 = sphi 0, %s62
      %s63 = sphi 0, %s60
      %s64 = sphi 0, %s63
      %s80 = sphi 0, %s64
    $region4: #{tpu_custom_call.1} parent=1 // loop_header_branch
      %13 = sbr.rel (%p11) target = $region8
    $region5: #{tpu_custom_call.1} parent=1 // loop_body
      %s15 = ssub.s32 %s10, 1
      %s16 = ssub.s32 %s10, 2
      %s23 = sadd.s32 1, %s18
      %p24 = scmp.ge.s32.totalorder %s23, 1
      %s25 = scalar_select %p24, 0, %s23
      %s26 = sadd.s32 1, %s17
      %s27 = scalar_select %p24, %s26, %s17
      %p28 = scmp.ge.s32.totalorder %s27, 2
      %s29 = scalar_select %p28, 0, %s27
      %s30 = ssub.s32 %s17, %s29
      %s31 = ssub.s32 %s18, %s25
      %s32 = sor.u32 %s30, %s31
      %p33 = scmp.eq.s32.totalorder %s32, 0
      %s35 = sadd.s32 %s34, 1
      %s36 = scalar_select %p33, %s34, %s35
      %p39 = pneg %p33
      %p40 = scmp.eq.s32.totalorder %s10, 1
      %p41 = por %p39, %p40
      %p42 = scmp.ne.s32.totalorder %s34, %s37
      %p43 = scmp.eq.s32.totalorder %s10, 0
      %p44 = por %p42, %p43
      %p45 = scmp.ne.s32.totalorder %s34, %s37
      %p46 = scmp.eq.s32.totalorder %s15, 1
      %p47 = por %p45, %p46
      %p48 = scmp.ne.s32.totalorder %s37, %s38
      %p49 = scmp.eq.s32.totalorder %s15, 0
      %p50 = por %p48, %p49
      %p51 = scmp.ne.s32.totalorder %s37, %s38
      %p52 = scmp.eq.s32.totalorder %s16, 1
      %p53 = por %p51, %p52
      %p55 = scmp.ne.s32.totalorder %s38, %s54
      %p56 = scmp.eq.s32.totalorder %s16, 0
      %p57 = por %p55, %p56
      %s58 = ssub.s32 %s17, %s29
      %p59 = scmp.eq.s32.totalorder %s58, 0
      %s61 = sadd.s32 %s60, 1
      %s62 = scalar_select %p59, %s60, %s61
      %p65 = pneg %p59
      %p66 = scmp.eq.s32.totalorder %s10, 1
      %p67 = por %p65, %p66
      %p68 = scmp.ne.s32.totalorder %s60, %s63
      %p69 = scmp.eq.s32.totalorder %s10, 0
      %p70 = por %p68, %p69
      %p71 = scmp.ne.s32.totalorder %s60, %s63
      %p72 = scmp.eq.s32.totalorder %s15, 1
      %p73 = por %p71, %p72
      %p74 = scmp.ne.s32.totalorder %s63, %s64
      %p75 = scmp.eq.s32.totalorder %s15, 0
      %p76 = por %p74, %p75
      %p77 = scmp.ne.s32.totalorder %s63, %s64
      %p78 = scmp.eq.s32.totalorder %s16, 1
      %p79 = por %p77, %p78
      %p81 = scmp.ne.s32.totalorder %s64, %s80
      %p82 = scmp.eq.s32.totalorder %s16, 0
      %p83 = por %p81, %p82
      %p84 = scmp.le.s32.totalorder 1, %s10
      %p85 = scmp.lt.s32.totalorder %s10, 3
      %p86 = pnand %p84, %p85
      %p87 = pneg %p86
      // Predicated region
      $region9: #{tpu_custom_call.1} parent=5 // pred_check
        _
      $region10: #{tpu_custom_call.1} parent=5 // pred_check_branch
        %89 = sbr.rel (%p86) target = $region12
      $region11: #{tpu_custom_call.1} parent=5 // pred_region
        %s90 = ssub.s32 %s10, 1
      $region12: #{tpu_custom_call.1} parent=5 // pred_fallthru
        _
      %p91 = scmp.lt.s32.totalorder %s10, 2
      // Predicated region
      $region13: #{tpu_custom_call.1} parent=5 // pred_check
        %p92 = pneg %p91
      $region14: #{tpu_custom_call.1} parent=5 // pred_check_branch
        %94 = sbr.rel (%p92) target = $region16
      $region15: #{tpu_custom_call.1} parent=5 // pred_region
        // Predicated region
        $region17: #{tpu_custom_call.1} parent=15 // pred_check
          %p95 = pneg %p44
        $region18: #{tpu_custom_call.1} parent=15 // pred_check_branch
          %97 = sbr.rel (%p95) target = $region20
        $region19: #{tpu_custom_call.1} parent=15 // pred_region
          %s98 = sand.u32 %s34, 1
          %s99 = scalar_lea.sflag [#allocation4], %s98
          %s100 = sand.u32 %s34, 1
          %s101 = smul.addr %s100, 8
          %s102 = scalar_lea.vmem [#allocation3], %s101
          %s103 = smul.u32 2, %s18
          %105 = vsyncadd %s99, 0
          %s106 = smul.addr %s17, 2
          %s107 = sadd.s32 %s103, %s106
          %s108 = smul.addr %s107, 4
          %s109 = scalar_lea.hbm %s0, %s108
          %s111 = sshll.u32 %s109, 4
          %s112 = int_to_ptr.hbm [resolvable:$true] %s111
          %s113 = sshll.u32 %s102, 4
          %s114 = int_to_ptr.vmem [resolvable:$true] %s113
          %116 = dma.hbm_to_vmem [thread:$0]  %s112, 128, %s114, %s99
        $region20: #{tpu_custom_call.1} parent=15 // pred_fallthru
          _
      $region16: #{tpu_custom_call.1} parent=5 // pred_fallthru
        _
      %p117 = scmp.le.s32.totalorder 1, %s10
      %p118 = scmp.lt.s32.totalorder %s10, 3
      %p119 = pnand %p117, %p118
      %p120 = pneg %p119
      // Predicated region
      $region21: #{tpu_custom_call.1} parent=5 // pred_check
        _
      $region22: #{tpu_custom_call.1} parent=5 // pred_check_branch
        %122 = sbr.rel (%p119) target = $region24
      $region23: #{tpu_custom_call.1} parent=5 // pred_region
        %s123 = ssub.s32 %s10, 1
        %s124 = sand.u32 %s37, 1
        %s125 = scalar_lea.sflag [#allocation4], %s124
        %s126 = sand.u32 %s37, 1
        %s127 = smul.addr %s126, 8
        %s128 = scalar_lea.vmem [#allocation3], %s127
        // Predicated region
        $region25: #{tpu_custom_call.1} parent=23 // pred_check
          %p129 = pneg %p50
        $region26: #{tpu_custom_call.1} parent=23 // pred_check_branch
          %131 = sbr.rel (%p129) target = $region28
        $region27: #{tpu_custom_call.1} parent=23 // pred_region
          %133 = dma.done %s125, 128
        $region28: #{tpu_custom_call.1} parent=23 // pred_fallthru
          _
        %s134 = sand.u32 %s37, 1
        %s135 = scalar_lea.sflag [#allocation4], %s134
        %s136 = sand.u32 %s37, 1
        %s137 = smul.addr %s136, 8
        %s138 = scalar_lea.vmem [#allocation3], %s137
        %p139 = pneg %p50
        %p140 = pneg %p47
        %p141 = pneg %p76
        %p142 = pneg %p73
        %p143 = scmp.lt.s32.totalorder %s19, 1
        %s144 = scalar_select %p143, %s19, 1
        %s145 = scalar_lea.vmem %s1, %s144
        %s146 = smul.u32 2, %s20
        %p147 = scmp.lt.s32.totalorder %s19, 1
        %s148 = scalar_select %p147, %s19, 1
        %s149 = scalar_lea.vmem %s1, %s148
        %p150 = scmp.eq.s32.totalorder %s20, 0
        // Predicated region
        $region29: #{tpu_custom_call.1} parent=23 // pred_check
          %p151 = pneg %p150
        $region30: #{tpu_custom_call.1} parent=23 // pred_check_branch
          %153 = sbr.rel (%p151) target = $region32
        $region31: #{tpu_custom_call.1} parent=23 // pred_region
          %154 = vst [vmem:[#allocation2] sm:$0xff] 0.0
        $region32: #{tpu_custom_call.1} parent=23 // pred_fallthru
          _
        %v155 = vld [vmem:[%s128] sm:$0xff]
        %157 = vst [vmem:[#allocation1] ss:$2 sm:$0xff] %v155
        %v158 = vld.sshfl [vmem:[#allocation1] sm:$0xff pattern:$0x75316420]
        %v159 = vld.sshfl [vmem:[#allocation1 + $0x8] sm:$0xff pattern:$0x75316420]
        %vm162 = vcmask 1043456
        %v163 = vsel %vm162, %v158, -inf
        %v164 = vrot.slane %v163, 4
        %v165 = vmax.f32 %v163, %v164
        %v166 = vrot.slane %v165, 2
        %v167 = vmax.f32 %v165, %v166
        %v168 = vrot.slane %v167, 1
        %v169 = vmax.f32 %v167, %v168
        %v170 = vsel %vm162, %v159, -inf
        %v171 = vrot.slane %v170, 4
        %v172 = vmax.f32 %v170, %v171
        %v173 = vrot.slane %v172, 2
        %v174 = vmax.f32 %v172, %v173
        %v175 = vrot.slane %v174, 1
        %v176 = vmax.f32 %v174, %v175
        %v179 = vrot.slane %v176, 4
        %v180 = vsel %vm162, %v169, %v179
        %v182 = vsub.f32 %v155, %v180
        %v183 = vmul.f32 %v182, 1.442695
        %v184 = vpow.pop %v183
        %186 = vst [vmem:[#allocation1] ss:$2 sm:$0xff] %v184
        %v187 = vld.sshfl [vmem:[#allocation1] sm:$0xff pattern:$0x75316420]
        %v188 = vld.sshfl [vmem:[#allocation1 + $0x8] sm:$0xff pattern:$0x75316420]
        %v191 = vsel %vm162, %v187, 0.0
        %v192 = vrot.slane %v191, 4
        %v193 = vadd.f32 %v191, %v192
        %v194 = vrot.slane %v193, 2
        %v195 = vadd.f32 %v193, %v194
        %v196 = vrot.slane %v195, 1
        %v197 = vadd.f32 %v195, %v196
        %v198 = vsel %vm162, %v188, 0.0
        %v199 = vrot.slane %v198, 4
        %v200 = vadd.f32 %v198, %v199
        %v201 = vrot.slane %v200, 2
        %v202 = vadd.f32 %v200, %v201
        %v203 = vrot.slane %v202, 1
        %v204 = vadd.f32 %v202, %v203
        %v205 = vrcp.pop %v197
        %v206 = vmul.f32 %v197, %v205
        %v207 = vsub.f32 1.0, %v206
        %v208 = vmul.f32 %v205, %v207
        %v209 = vadd.f32 %v205, %v208
        %vm210 = vweird.f32 %v197
        %vm211 = vweird.f32 %v205
        %vm212 = vmor %vm210, %vm211
        %v213 = vsel %vm212, %v205, %v209
        %v214 = vand.u32 2147483647, %v197
        %vm215 = vcmp.eq.f32.partialorder %v214, 8.507059e+37
        %v216 = vand.u32 %v197, 2147483648
        %v217 = vor.u32 1.1754944e-38, %v216
        %v218 = vsel %vm215, %v217, %v213
        %v219 = vrcp.pop %v204
        %v220 = vmul.f32 %v204, %v219
        %v221 = vsub.f32 1.0, %v220
        %v222 = vmul.f32 %v219, %v221
        %v223 = vadd.f32 %v219, %v222
        %vm224 = vweird.f32 %v204
        %vm225 = vweird.f32 %v219
        %vm226 = vmor %vm224, %vm225
        %v227 = vsel %vm226, %v219, %v223
        %v228 = vand.u32 2147483647, %v204
        %vm229 = vcmp.eq.f32.partialorder %v228, 8.507059e+37
        %v230 = vand.u32 %v204, 2147483648
        %v231 = vor.u32 1.1754944e-38, %v230
        %v232 = vsel %vm229, %v231, %v227
        %v235 = vrot.slane %v232, 4
        %v236 = vsel %vm162, %v218, %v235
        %v238 = vmul.f32 %v184, %v236
        %v239 = vsub.f32 0.0, %v238
        %v240 = vadd.f32 %v238, 1e-06
        %v241 = vlog2.pop %v240
        %v242 = vmul.f32 %v241, 0.6931472
        %v243 = vmul.f32 %v239, %v242
        %v244 = vld [vmem:[#allocation2] sm:$0xff]
        %v245 = vadd.f32 %v244, %v243
        %246 = vst [vmem:[#allocation2] sm:$0xff] %v245
        // Predicated region
        $region33: #{tpu_custom_call.1} parent=23 // pred_check
          %p247 = pneg %p150
        $region34: #{tpu_custom_call.1} parent=23 // pred_check_branch
          %249 = sbr.rel (%p247) target = $region36
        $region35: #{tpu_custom_call.1} parent=23 // pred_region
          %v250 = vld [vmem:[#allocation2] sm:$0xff]
          %252 = vst [vmem:[#allocation1] ss:$2 sm:$0xff] %v250
          %v253 = vld.sshfl [vmem:[#allocation1] sm:$0xff pattern:$0x75316420]
          %v254 = vld.sshfl [vmem:[#allocation1 + $0x8] sm:$0xff pattern:$0x75316420]
          %v257 = vsel %vm162, %v253, 0.0
          %v258 = vsel %vm162, %v254, 0.0
          %v259 = vadd.f32 %v257, %v258
          %260 = vadd.xlane.f32.xlu0 %v259
          %v261 = vpop.xlane.xlu0 %260
          %v262 = vrot.slane %v261, 4
          %v263 = vadd.f32 %v261, %v262
          %v264 = vrot.slane %v263, 2
          %v265 = vadd.f32 %v263, %v264
          %v266 = vrot.slane %v265, 1
          %v267 = vadd.f32 %v265, %v266
          %s268 = vtos %v267
          %s269 = smul.f32 %s268, 0.00048828125
          %v270 = vstv %s269
          %vm271 = vcmask 0
          %272 = vst.msk [vmem:[%s149] sm:$0x1] %vm271, %v270
        $region36: #{tpu_custom_call.1} parent=23 // pred_fallthru
          _
        %p273 = scmp.lt.s32.totalorder %s19, 1
        %s274 = scalar_select %p273, %s19, 1
        %s275 = scalar_lea.vmem %s1, %s274
        // Predicated region
        $region37: #{tpu_custom_call.1} parent=23 // pred_check
          %p276 = pneg %p73
        $region38: #{tpu_custom_call.1} parent=23 // pred_check_branch
          %278 = sbr.rel (%p276) target = $region40
        $region39: #{tpu_custom_call.1} parent=23 // pred_region
          _
        $region40: #{tpu_custom_call.1} parent=23 // pred_fallthru
          _
      $region24: #{tpu_custom_call.1} parent=5 // pred_fallthru
        _
      %p279 = scmp.le.s32.totalorder 2, %s10
      // Predicated region
      $region41: #{tpu_custom_call.1} parent=5 // pred_check
        %p280 = pneg %p279
      $region42: #{tpu_custom_call.1} parent=5 // pred_check_branch
        %282 = sbr.rel (%p280) target = $region44
      $region43: #{tpu_custom_call.1} parent=5 // pred_region
        %s283 = ssub.s32 %s10, 2
        // Predicated region
        $region45: #{tpu_custom_call.1} parent=43 // pred_check
          %p284 = pneg %p79
        $region46: #{tpu_custom_call.1} parent=43 // pred_check_branch
          %286 = sbr.rel (%p284) target = $region48
        $region47: #{tpu_custom_call.1} parent=43 // pred_region
          %p287 = scmp.lt.s32.totalorder %s21, 1
          %s288 = scalar_select %p287, %s21, 1
          %s289 = scalar_lea.vmem %s1, %s288
        $region48: #{tpu_custom_call.1} parent=43 // pred_fallthru
          _
      $region44: #{tpu_custom_call.1} parent=5 // pred_fallthru
        _
    $region6: #{tpu_custom_call.1} parent=1 // loop_footer
      %s14 = sadd.s32 1, %s10
    $region7: #{tpu_custom_call.1} parent=1 // loop_footer_branch
      %9 = sbr.rel target = $region3
    $region8: #{tpu_custom_call.1} parent=1 // loop_exit
      _
    %290 = vsyncpa [#allocation4], 1
    %s291 = scalar_lea.sflag [#allocation4], 1
    %292 = vsyncpa %s291, 1

</llo_original>
